<compile_context>
chip_gen: v6e
topology: v6e:2x2x1
jax: 0.10.0
libtpu: 0.0.40
codegen_flags: <defaults>
</compile_context>

<pallas_src>
import jax
import jax.numpy as jnp
from jax.experimental import pallas as pl
from jax.experimental.pallas import tpu as pltpu


def _round_up(x, m):
    return ((x + m - 1) // m) * m


def dueling_dqn_kernel(
    x_ref,
    w1_ref, b1_ref,
    w2_ref, b2_ref,
    wbr1_ref, bbr1_ref,
    wq_ref, bq_ref,
    out_ref,
):
    x = x_ref[...]                                                   # (BT, S)

    # shared trunk: Linear(S,256) + ReLU, Linear(256,128) + ReLU
    h1 = jnp.dot(x, w1_ref[...], preferred_element_type=jnp.float32) + b1_ref[...]
    h1 = jnp.maximum(h1, 0.0)
    h2 = jnp.dot(h1, w2_ref[...], preferred_element_type=jnp.float32) + b2_ref[...]
    h2 = jnp.maximum(h2, 0.0)                                        # (BT, 128)

    # fused branch stage 1: (BT,128) @ (128,128) -> [adv_hidden | val_hidden]
    br1 = jnp.dot(h2, wbr1_ref[...], preferred_element_type=jnp.float32) + bbr1_ref[...]
    br1 = jnp.maximum(br1, 0.0)                                      # (BT, 128)

    # fused branch stage 2 with the dueling combine folded into the weights:
    #   lanes [0, A)  = Q = V + A - mean(A),   lanes >= A = 0
    q = jnp.dot(br1, wq_ref[...], preferred_element_type=jnp.float32) + bq_ref[...]
    out_ref[...] = q.astype(out_ref.dtype)                           # (BT, N_pad)


def dueling_dqn_forward(x, params, *, batch_tile=None):
    """x: (B, state_size) f32.  params: weights (in,out) / biases (1,out).
    Returns (B, action_size) f32."""
    B, S = x.shape
    A = params["wa2"].shape[1]
    HB = params["wa1"].shape[1]            # 64 (branch hidden)

    # ---- fuse advantage/value stage-1 into one MXU-native 128-wide weight ----
    wbr1 = jnp.concatenate([params["wa1"], params["wv1"]], axis=1)   # (128, 128)
    bbr1 = jnp.concatenate([params["ba1"], params["bv1"]], axis=1)   # (1, 128)

    # ---- fold Q = V + A - mean(A) into the stage-2 weight/bias --------------
    #   Q_j = adv_h . (Wa2[:,j] - mean_k Wa2[:,k]) + val_g . wv2
    #         + (ba2_j - mean(ba2) + bv2)
    n_pad = _round_up(A, 128)                                        # lane-dense output
    wa2_c = params["wa2"] - jnp.mean(params["wa2"], axis=1, keepdims=True)
    ba2_c = params["ba2"] - jnp.mean(params["ba2"], axis=1, keepdims=True)

    wq = jnp.zeros((2 * HB, n_pad), jnp.float32)
    wq = wq.at[:HB, :A].set(wa2_c)                                   # centered adv block
    wq = wq.at[HB:, :A].set(jnp.broadcast_to(params["wv2"], (HB, A)))  # value block
    bq = jnp.zeros((1, n_pad), jnp.float32)
    bq = bq.at[:, :A].set(ba2_c + params["bv2"])

    # ---- adaptive batch tile + grid -----------------------------------------
    if batch_tile is None:
        bt = min(512, _round_up(B, 8))     # single step for small batches
    else:
        bt = batch_tile
    b_pad = _round_up(B, bt)
    if b_pad != B:
        x = jnp.pad(x, ((0, b_pad - B), (0, 0)))
    grid = (pl.cdiv(b_pad, bt),)

    operands = (
        x,
        params["w1"], params["b1"],
        params["w2"], params["b2"],
        wbr1, bbr1,
        wq, bq,
    )

    # x/out tiled along the batch grid; weights/biases resident (constant map).
    def resident_spec(shape):
        return pl.BlockSpec(shape, lambda i: (0, 0))

    in_specs = [pl.BlockSpec((bt, S), lambda i: (i, 0))]
    in_specs += [resident_spec(op.shape) for op in operands[1:]]
    out_spec = pl.BlockSpec((bt, n_pad), lambda i: (i, 0))

    out_padded = pl.pallas_call(
        dueling_dqn_kernel,
        out_shape=jax.ShapeDtypeStruct((b_pad, n_pad), jnp.float32),
        grid=grid,
        in_specs=in_specs,
        out_specs=out_spec,
        compiler_params=pltpu.CompilerParams(
            dimension_semantics=("parallel",)),     # v7x: shard batch over 2 TCs
    )(*operands)

    return out_padded[:B, :A]


def init_params(key, state_size, action_size):
    """Deterministic init mimicking PyTorch nn.Linear default (U[-1/sqrt(fan_in), +])."""
    def linear(key, fan_in, fan_out):
        kw, kb = jax.random.split(key)
        bound = 1.0 / jnp.sqrt(jnp.float32(fan_in))
        w = jax.random.uniform(kw, (fan_in, fan_out), jnp.float32, -bound, bound)
        b = jax.random.uniform(kb, (1, fan_out), jnp.float32, -bound, bound)
        return w, b

    keys = jax.random.split(key, 6)
    w1, b1 = linear(keys[0], state_size, 256)
    w2, b2 = linear(keys[1], 256, 128)
    wa1, ba1 = linear(keys[2], 128, 64)
    wa2, ba2 = linear(keys[3], 64, action_size)
    wv1, bv1 = linear(keys[4], 128, 64)
    wv2, bv2 = linear(keys[5], 64, 1)
    return dict(w1=w1, b1=b1, w2=w2, b2=b2,
                wa1=wa1, ba1=ba1, wa2=wa2, ba2=ba2,
                wv1=wv1, bv1=bv1, wv2=wv2, bv2=bv2)


def reference_forward(x, p):
    """Pure-JAX reference of the PyTorch module for sanity checking."""
    h = jnp.maximum(x @ p["w1"] + p["b1"], 0.0)
    h = jnp.maximum(h @ p["w2"] + p["b2"], 0.0)
    a = jnp.maximum(h @ p["wa1"] + p["ba1"], 0.0) @ p["wa2"] + p["ba2"]
    v = jnp.maximum(h @ p["wv1"] + p["bv1"], 0.0) @ p["wv2"] + p["bv2"]
    return v + a - jnp.mean(a, axis=1, keepdims=True)


if __name__ == "__main__":
    key = jax.random.PRNGKey(0)
    k_x, k_p, k_x2, k_x3 = jax.random.split(key, 4)

    state_size = 16
    action_size = 4
    params = init_params(k_p, state_size, action_size)

    # small batch (single 8-row tile, one grid step)
    batch = 2
    x = jax.random.normal(k_x, (batch, state_size), jnp.float32)
    out = jax.block_until_ready(dueling_dqn_forward(x, params))
    ref = reference_forward(x, params)
    assert out.shape == (batch, action_size)
    assert jnp.allclose(out, ref, atol=1e-5, rtol=1e-5), "mismatch vs reference (B=2)"

    # mid-size, non-8-aligned batch (single adaptive tile, padded rows)
    batch2 = 300
    x2 = jax.random.normal(k_x2, (batch2, state_size), jnp.float32)
    out2 = jax.block_until_ready(dueling_dqn_forward(x2, params))
    ref2 = reference_forward(x2, params)
    assert out2.shape == (batch2, action_size)
    assert jnp.allclose(out2, ref2, atol=1e-5, rtol=1e-5), "mismatch vs reference (B=300)"

    # large batch: exercises the multi-step 512-row tile grid + padding path
    batch3 = 1500
    x3 = jax.random.normal(k_x3, (batch3, state_size), jnp.float32)
    out3 = jax.block_until_ready(dueling_dqn_forward(x3, params))
    ref3 = reference_forward(x3, params)
    assert out3.shape == (batch3, action_size)
    assert jnp.allclose(out3, ref3, atol=1e-5, rtol=1e-5), "mismatch vs reference (B=1500)"

    print("KERNEL_OK")
</pallas_src>

<mosaic_0001>
module attributes {stable_mosaic.version = 11 : i64} {
  func.func @dueling_dqn_kernel(%arg0: i32, %arg1: memref<8x16xf32, #tpu.memory_space<vmem>>, %arg2: memref<16x256xf32, #tpu.memory_space<vmem>>, %arg3: memref<1x256xf32, #tpu.memory_space<vmem>>, %arg4: memref<256x128xf32, #tpu.memory_space<vmem>>, %arg5: memref<1x128xf32, #tpu.memory_space<vmem>>, %arg6: memref<128x128xf32, #tpu.memory_space<vmem>>, %arg7: memref<1x128xf32, #tpu.memory_space<vmem>>, %arg8: memref<128x128xf32, #tpu.memory_space<vmem>>, %arg9: memref<1x128xf32, #tpu.memory_space<vmem>>, %arg10: memref<8x128xf32, #tpu.memory_space<vmem>>) attributes {dimension_semantics = [#tpu.dimension_semantics<parallel>], iteration_bounds = array<i64: 1>, scalar_prefetch = 0 : i64, scratch_operands = 0 : i64, tpu.core_type = #tpu.core_type<tc>, window_params = [{transform_indices = @transform_0, window_bounds = array<i64: 8, 16>}, {pipeline_mode = #tpu.pipeline_mode<synchronous>, transform_indices = @transform_1, window_bounds = array<i64: 16, 256>}, {pipeline_mode = #tpu.pipeline_mode<synchronous>, transform_indices = @transform_2, window_bounds = array<i64: 1, 256>}, {pipeline_mode = #tpu.pipeline_mode<synchronous>, transform_indices = @transform_3, window_bounds = array<i64: 256, 128>}, {pipeline_mode = #tpu.pipeline_mode<synchronous>, transform_indices = @transform_4, window_bounds = array<i64: 1, 128>}, {pipeline_mode = #tpu.pipeline_mode<synchronous>, transform_indices = @transform_5, window_bounds = array<i64: 128, 128>}, {pipeline_mode = #tpu.pipeline_mode<synchronous>, transform_indices = @transform_6, window_bounds = array<i64: 1, 128>}, {pipeline_mode = #tpu.pipeline_mode<synchronous>, transform_indices = @transform_7, window_bounds = array<i64: 128, 128>}, {pipeline_mode = #tpu.pipeline_mode<synchronous>, transform_indices = @transform_8, window_bounds = array<i64: 1, 128>}, {transform_indices = @transform_9, window_bounds = array<i64: 8, 128>}]} {
    %c0 = arith.constant 0 : index
    %c0_0 = arith.constant 0 : index
    %0 = vector.load %arg1[%c0, %c0_0] : memref<8x16xf32, #tpu.memory_space<vmem>>, vector<8x16xf32>
    %c0_1 = arith.constant 0 : index
    %c0_2 = arith.constant 0 : index
    %1 = vector.load %arg2[%c0_1, %c0_2] : memref<16x256xf32, #tpu.memory_space<vmem>>, vector<16x256xf32>
    %cst = arith.constant dense<0.000000e+00> : vector<8x256xf32>
    %2 = tpu.matmul %0, %1, %cst {dimension_numbers = #tpu.dot_dimension_numbers<[1], [0], [0], [1], [0, 0, 1, 1], [], []>} : vector<8x16xf32>, vector<16x256xf32>, vector<8x256xf32> -> vector<8x256xf32>
    %c0_3 = arith.constant 0 : index
    %c0_4 = arith.constant 0 : index
    %3 = vector.load %arg3[%c0_3, %c0_4] : memref<1x256xf32, #tpu.memory_space<vmem>>, vector<1x256xf32>
    %4 = vector.broadcast %3 : vector<1x256xf32> to vector<8x256xf32>
    %5 = arith.addf %2, %4 : vector<8x256xf32>
    %cst_5 = arith.constant 0.000000e+00 : f32
    %6 = vector.broadcast %cst_5 : f32 to vector<8x256xf32>
    %7 = arith.maximumf %5, %6 : vector<8x256xf32>
    %c0_6 = arith.constant 0 : index
    %c0_7 = arith.constant 0 : index
    %8 = vector.load %arg4[%c0_6, %c0_7] : memref<256x128xf32, #tpu.memory_space<vmem>>, vector<256x128xf32>
    %cst_8 = arith.constant dense<0.000000e+00> : vector<8x128xf32>
    %9 = tpu.matmul %7, %8, %cst_8 {dimension_numbers = #tpu.dot_dimension_numbers<[1], [0], [0], [1], [0, 0, 1, 1], [], []>} : vector<8x256xf32>, vector<256x128xf32>, vector<8x128xf32> -> vector<8x128xf32>
    %c0_9 = arith.constant 0 : index
    %c0_10 = arith.constant 0 : index
    %10 = vector.load %arg5[%c0_9, %c0_10] : memref<1x128xf32, #tpu.memory_space<vmem>>, vector<1x128xf32>
    %11 = vector.broadcast %10 : vector<1x128xf32> to vector<8x128xf32>
    %12 = arith.addf %9, %11 : vector<8x128xf32>
    %cst_11 = arith.constant 0.000000e+00 : f32
    %13 = vector.broadcast %cst_11 : f32 to vector<8x128xf32>
    %14 = arith.maximumf %12, %13 : vector<8x128xf32>
    %c0_12 = arith.constant 0 : index
    %c0_13 = arith.constant 0 : index
    %15 = vector.load %arg6[%c0_12, %c0_13] : memref<128x128xf32, #tpu.memory_space<vmem>>, vector<128x128xf32>
    %cst_14 = arith.constant dense<0.000000e+00> : vector<8x128xf32>
    %16 = tpu.matmul %14, %15, %cst_14 {dimension_numbers = #tpu.dot_dimension_numbers<[1], [0], [0], [1], [0, 0, 1, 1], [], []>} : vector<8x128xf32>, vector<128x128xf32>, vector<8x128xf32> -> vector<8x128xf32>
    %c0_15 = arith.constant 0 : index
    %c0_16 = arith.constant 0 : index
    %17 = vector.load %arg7[%c0_15, %c0_16] : memref<1x128xf32, #tpu.memory_space<vmem>>, vector<1x128xf32>
    %18 = vector.broadcast %17 : vector<1x128xf32> to vector<8x128xf32>
    %19 = arith.addf %16, %18 : vector<8x128xf32>
    %cst_17 = arith.constant 0.000000e+00 : f32
    %20 = vector.broadcast %cst_17 : f32 to vector<8x128xf32>
    %21 = arith.maximumf %19, %20 : vector<8x128xf32>
    %c0_18 = arith.constant 0 : index
    %c0_19 = arith.constant 0 : index
    %22 = vector.load %arg8[%c0_18, %c0_19] : memref<128x128xf32, #tpu.memory_space<vmem>>, vector<128x128xf32>
    %cst_20 = arith.constant dense<0.000000e+00> : vector<8x128xf32>
    %23 = tpu.matmul %21, %22, %cst_20 {dimension_numbers = #tpu.dot_dimension_numbers<[1], [0], [0], [1], [0, 0, 1, 1], [], []>} : vector<8x128xf32>, vector<128x128xf32>, vector<8x128xf32> -> vector<8x128xf32>
    %c0_21 = arith.constant 0 : index
    %c0_22 = arith.constant 0 : index
    %24 = vector.load %arg9[%c0_21, %c0_22] : memref<1x128xf32, #tpu.memory_space<vmem>>, vector<1x128xf32>
    %25 = vector.broadcast %24 : vector<1x128xf32> to vector<8x128xf32>
    %26 = arith.addf %23, %25 : vector<8x128xf32>
    %c0_23 = arith.constant 0 : index
    %c0_24 = arith.constant 0 : index
    %27 = vector.load %arg10[%c0_23, %c0_24] : memref<8x128xf32, #tpu.memory_space<vmem>>, vector<8x128xf32>
    tpu.vector_store %arg10[%c0_23, %c0_24], %26 {strides = array<i32>} : memref<8x128xf32, #tpu.memory_space<vmem>>, vector<8x128xf32>,
    return
  }
  func.func @transform_0(%arg0: i32) -> (i32, i32) {
    %c0_i32 = arith.constant 0 : i32
    %c0_i32_0 = arith.constant 0 : i32
    return %arg0, %c0_i32 : i32, i32
  }
  func.func @transform_1(%arg0: i32) -> (i32, i32) {
    %c0_i32 = arith.constant 0 : i32
    %c0_i32_0 = arith.constant 0 : i32
    %c0_i32_1 = arith.constant 0 : i32
    return %c0_i32, %c0_i32_0 : i32, i32
  }
  func.func @transform_2(%arg0: i32) -> (i32, i32) {
    %c0_i32 = arith.constant 0 : i32
    %c0_i32_0 = arith.constant 0 : i32
    %c0_i32_1 = arith.constant 0 : i32
    return %c0_i32, %c0_i32_0 : i32, i32
  }
  func.func @transform_3(%arg0: i32) -> (i32, i32) {
    %c0_i32 = arith.constant 0 : i32
    %c0_i32_0 = arith.constant 0 : i32
    %c0_i32_1 = arith.constant 0 : i32
    return %c0_i32, %c0_i32_0 : i32, i32
  }
  func.func @transform_4(%arg0: i32) -> (i32, i32) {
    %c0_i32 = arith.constant 0 : i32
    %c0_i32_0 = arith.constant 0 : i32
    %c0_i32_1 = arith.constant 0 : i32
    return %c0_i32, %c0_i32_0 : i32, i32
  }
  func.func @transform_5(%arg0: i32) -> (i32, i32) {
    %c0_i32 = arith.constant 0 : i32
    %c0_i32_0 = arith.constant 0 : i32
    %c0_i32_1 = arith.constant 0 : i32
    return %c0_i32, %c0_i32_0 : i32, i32
  }
  func.func @transform_6(%arg0: i32) -> (i32, i32) {
    %c0_i32 = arith.constant 0 : i32
    %c0_i32_0 = arith.constant 0 : i32
    %c0_i32_1 = arith.constant 0 : i32
    return %c0_i32, %c0_i32_0 : i32, i32
  }
  func.func @transform_7(%arg0: i32) -> (i32, i32) {
    %c0_i32 = arith.constant 0 : i32
    %c0_i32_0 = arith.constant 0 : i32
    %c0_i32_1 = arith.constant 0 : i32
    return %c0_i32, %c0_i32_0 : i32, i32
  }
  func.func @transform_8(%arg0: i32) -> (i32, i32) {
    %c0_i32 = arith.constant 0 : i32
    %c0_i32_0 = arith.constant 0 : i32
    %c0_i32_1 = arith.constant 0 : i32
    return %c0_i32, %c0_i32_0 : i32, i32
  }
  func.func @transform_9(%arg0: i32) -> (i32, i32) {
    %c0_i32 = arith.constant 0 : i32
    %c0_i32_0 = arith.constant 0 : i32
    return %arg0, %c0_i32 : i32, i32
  }
}

</mosaic_0001>

<llo_original>
// kernel: tpu_custom_call.1
$region0: #{tpu_custom_call.1}
  #allocation0 [shape = 'u32[]', space=smem, size = 0x4, offset = 0x4, fixed_abs, tag = 'smem constant byte address 0x4 - core index']
  #allocation1 [shape = 'u32[144,128]{1,0:T(1,128)}', space=vmem, size = 0x12000, scoped, tag = 'internal scratch']
  %s0 = inlined_call_operand.hbm [shape: f32[8,16], index: 0, kind: input, shape index: {}]
  %s1 = inlined_call_operand.hbm [shape: f32[16,256], index: 1, kind: input, shape index: {}]
  %s2 = inlined_call_operand.vmem [shape: f32[1,256], index: 2, kind: input, shape index: {}]
  %s3 = inlined_call_operand.hbm [shape: f32[256,128], index: 3, kind: input, shape index: {}]
  %s4 = inlined_call_operand.vmem [shape: f32[1,128], index: 4, kind: input, shape index: {}]
  %s5 = inlined_call_operand.hbm [shape: f32[128,128], index: 5, kind: input, shape index: {}]
  %s6 = inlined_call_operand.vmem [shape: f32[1,128], index: 6, kind: input, shape index: {}]
  %s7 = inlined_call_operand.hbm [shape: f32[128,128], index: 7, kind: input, shape index: {}]
  %s8 = inlined_call_operand.vmem [shape: f32[1,128], index: 8, kind: input, shape index: {}]
  %s9 = inlined_call_operand.hbm [shape: f32[8,128], index: 9, kind: output, shape index: {}]
  %s10 = sld [smem:[#allocation0]]
  $region66: #{tpu_custom_call.1} parent=0
    _
  %s12 = ssub.s32 1, %s10
  %s13 = scalar_select 0, %s12, %s10
  $region1: #{tpu_custom_call.1} parent=0
    #allocation2 [shape = 'u8[4096]{0}', space=vmem, size = 0x1000, scoped, tag = 'input window, operand 0, single buffered']
    #allocation3 [shape = 's32[1]{0}', space=sflag, size = 0x4, scoped, tag = 'scoped memory for tpu_custom_call.1']
    #allocation4 [shape = 's32[1]{0}', space=sflag, size = 0x4, scoped, tag = 'scoped memory for tpu_custom_call.1']
    #allocation5 [shape = 'u8[16384]{0}', space=vmem, size = 0x4000, scoped, tag = 'input window, operand 1, single buffered']
    #allocation6 [shape = 's32[1]{0}', space=sflag, size = 0x4, scoped, tag = 'scoped memory for tpu_custom_call.1']
    #allocation7 [shape = 'u8[131072]{0}', space=vmem, size = 0x20000, scoped, tag = 'input window, operand 3, single buffered']
    #allocation8 [shape = 'u8[65536]{0}', space=vmem, size = 0x10000, scoped, tag = 'input window, operand 5, single buffered']
    #allocation9 [shape = 's32[1]{0}', space=sflag, size = 0x4, scoped, tag = 'scoped memory for tpu_custom_call.1']
    #allocation10 [shape = 'u8[65536]{0}', space=vmem, size = 0x10000, scoped, tag = 'input window, operand 7, single buffered']
    #allocation11 [shape = 'u8[4096]{0}', space=vmem, size = 0x1000, scoped, tag = 'output window, operand 0, single buffered']
    %14 = vsyncpa [#allocation3], 0
    %15 = vsyncpa [#allocation6], 0
    %16 = vsyncpa [#allocation9], 0
    %17 = vsyncpa [#allocation4], 0
    // Predicated region
    $region2: #{tpu_custom_call.1} parent=1 // pred_check
      _
    $region3: #{tpu_custom_call.1} parent=1 // pred_check_branch
      %19 = sbr.rel (0) target = $region5
    $region4: #{tpu_custom_call.1} parent=1 // pred_region
      %s21 = ssub.s32 128, 128
      %22 = vsyncadd [#allocation3], %s21
      %s24 = sshll.u32 [#allocation2], 4
      %s25 = int_to_ptr.vmem [resolvable:$true] %s24
      %27 = dma.hbm_to_vmem [thread:$0]  %s0, 128, %s25, [#allocation3]
    $region5: #{tpu_custom_call.1} parent=1 // pred_fallthru
      _
    // Predicated region
    $region6: #{tpu_custom_call.1} parent=1 // pred_check
      _
    $region7: #{tpu_custom_call.1} parent=1 // pred_check_branch
      %29 = sbr.rel (0) target = $region9
    $region8: #{tpu_custom_call.1} parent=1 // pred_region
      %s31 = ssub.s32 512, 512
      %32 = vsyncadd [#allocation6], %s31
      %s33 = sshll.u32 [#allocation5], 4
      %s34 = int_to_ptr.vmem [resolvable:$true] %s33
      %39 = dma.hbm_to_vmem [thread:$0]  %s1, 512, %s34, [#allocation6], 256, 256, 16
    $region9: #{tpu_custom_call.1} parent=1 // pred_fallthru
      _
    // Predicated region
    $region10: #{tpu_custom_call.1} parent=1 // pred_check
      _
    $region11: #{tpu_custom_call.1} parent=1 // pred_check_branch
      %41 = sbr.rel (0) target = $region13
    $region12: #{tpu_custom_call.1} parent=1 // pred_region
      _
    $region13: #{tpu_custom_call.1} parent=1 // pred_fallthru
      _
    // Predicated region
    $region14: #{tpu_custom_call.1} parent=1 // pred_check
      _
    $region15: #{tpu_custom_call.1} parent=1 // pred_check_branch
      %43 = sbr.rel (0) target = $region17
    $region16: #{tpu_custom_call.1} parent=1 // pred_region
      %s45 = ssub.s32 4096, 4096
      %46 = vsyncadd [#allocation6], %s45
      %s47 = sshll.u32 [#allocation7], 4
      %s48 = int_to_ptr.vmem [resolvable:$true] %s47
      %53 = dma.hbm_to_vmem [thread:$0]  %s3, 4096, %s48, [#allocation6], 128, 128, 8
    $region17: #{tpu_custom_call.1} parent=1 // pred_fallthru
      _
    // Predicated region
    $region18: #{tpu_custom_call.1} parent=1 // pred_check
      _
    $region19: #{tpu_custom_call.1} parent=1 // pred_check_branch
      %55 = sbr.rel (0) target = $region21
    $region20: #{tpu_custom_call.1} parent=1 // pred_region
      _
    $region21: #{tpu_custom_call.1} parent=1 // pred_fallthru
      _
    // Predicated region
    $region22: #{tpu_custom_call.1} parent=1 // pred_check
      _
    $region23: #{tpu_custom_call.1} parent=1 // pred_check_branch
      %57 = sbr.rel (0) target = $region25
    $region24: #{tpu_custom_call.1} parent=1 // pred_region
      %s59 = ssub.s32 2048, 2048
      %60 = vsyncadd [#allocation9], %s59
      %s61 = sshll.u32 [#allocation8], 4
      %s62 = int_to_ptr.vmem [resolvable:$true] %s61
      %67 = dma.hbm_to_vmem [thread:$0]  %s5, 2048, %s62, [#allocation9], 128, 128, 8
    $region25: #{tpu_custom_call.1} parent=1 // pred_fallthru
      _
    // Predicated region
    $region26: #{tpu_custom_call.1} parent=1 // pred_check
      _
    $region27: #{tpu_custom_call.1} parent=1 // pred_check_branch
      %69 = sbr.rel (0) target = $region29
    $region28: #{tpu_custom_call.1} parent=1 // pred_region
      _
    $region29: #{tpu_custom_call.1} parent=1 // pred_fallthru
      _
    // Predicated region
    $region30: #{tpu_custom_call.1} parent=1 // pred_check
      _
    $region31: #{tpu_custom_call.1} parent=1 // pred_check_branch
      %71 = sbr.rel (0) target = $region33
    $region32: #{tpu_custom_call.1} parent=1 // pred_region
      %s73 = ssub.s32 2048, 2048
      %74 = vsyncadd [#allocation9], %s73
      %s75 = sshll.u32 [#allocation10], 4
      %s76 = int_to_ptr.vmem [resolvable:$true] %s75
      %81 = dma.hbm_to_vmem [thread:$0]  %s7, 2048, %s76, [#allocation9], 128, 128, 8
    $region33: #{tpu_custom_call.1} parent=1 // pred_fallthru
      _
    // Predicated region
    $region34: #{tpu_custom_call.1} parent=1 // pred_check
      _
    $region35: #{tpu_custom_call.1} parent=1 // pred_check_branch
      %83 = sbr.rel (0) target = $region37
    $region36: #{tpu_custom_call.1} parent=1 // pred_region
      _
    $region37: #{tpu_custom_call.1} parent=1 // pred_fallthru
      _
    // Predicated region
    $region38: #{tpu_custom_call.1} parent=1 // pred_check
      _
    $region39: #{tpu_custom_call.1} parent=1 // pred_check_branch
      %85 = sbr.rel (0) target = $region41
    $region40: #{tpu_custom_call.1} parent=1 // pred_region
      %86 = dma.done [#allocation3], 128
    $region41: #{tpu_custom_call.1} parent=1 // pred_fallthru
      _
    // Predicated region
    $region42: #{tpu_custom_call.1} parent=1 // pred_check
      _
    $region43: #{tpu_custom_call.1} parent=1 // pred_check_branch
      %88 = sbr.rel (0) target = $region45
    $region44: #{tpu_custom_call.1} parent=1 // pred_region
      %89 = dma.done [#allocation6], 512
    $region45: #{tpu_custom_call.1} parent=1 // pred_fallthru
      _
    // Predicated region
    $region46: #{tpu_custom_call.1} parent=1 // pred_check
      _
    $region47: #{tpu_custom_call.1} parent=1 // pred_check_branch
      %91 = sbr.rel (0) target = $region49
    $region48: #{tpu_custom_call.1} parent=1 // pred_region
      %92 = dma.done [#allocation6], 4096
    $region49: #{tpu_custom_call.1} parent=1 // pred_fallthru
      _
    // Predicated region
    $region50: #{tpu_custom_call.1} parent=1 // pred_check
      _
    $region51: #{tpu_custom_call.1} parent=1 // pred_check_branch
      %94 = sbr.rel (0) target = $region53
    $region52: #{tpu_custom_call.1} parent=1 // pred_region
      %95 = dma.done [#allocation9], 2048
    $region53: #{tpu_custom_call.1} parent=1 // pred_fallthru
      _
    // Predicated region
    $region54: #{tpu_custom_call.1} parent=1 // pred_check
      _
    $region55: #{tpu_custom_call.1} parent=1 // pred_check_branch
      %97 = sbr.rel (0) target = $region57
    $region56: #{tpu_custom_call.1} parent=1 // pred_region
      %98 = dma.done [#allocation9], 2048
    $region57: #{tpu_custom_call.1} parent=1 // pred_fallthru
      _
    %v99 = vld [vmem:[#allocation2] sm:$0xff]
    %v100 = vld [vmem:[#allocation5] sm:$0xff]
    %v101 = vld [vmem:[#allocation5 + $0x8] sm:$0xff]
    %v102 = vld [vmem:[#allocation5 + $0x10] sm:$0xff]
    %v103 = vld [vmem:[#allocation5 + $0x18] sm:$0xff]
    %v104 = vld [vmem:[%s2] sm:$0x3]
    %v106 = vlaneseq
    %v107 = vshrl.u32 %v106, 7
    %v108 = vsub.s32 0, %v107
    %v109 = vrot.slane %v104, %v108
    %v110 = vlaneseq
    %v111 = vshrl.u32 %v110, 7
    %v112 = vsub.s32 1, %v111
    %v113 = vrot.slane %v104, %v112
    %vm116 = vcmask 130048
    %v118 = vsel %vm116, %v99, 0
    %120 = vmatprep.subr.mxu0 0.0
    %121 = vmatpush1.msra.mxu0 0.0
    %122 = vmatprep.subr.mxu0 0.0
    %123 = vmatpush1.msra.mxu0 0.0
    %124 = vmatprep.subr.mxu0 0.0
    %125 = vmatpush1.msra.mxu0 0.0
    %126 = vmatprep.subr.mxu0 0.0
    %127 = vmatpush1.msra.mxu0 0.0
    %128 = vmatprep.subr.mxu0 0.0
    %129 = vmatpush1.msra.mxu0 0.0
    %130 = vmatprep.subr.mxu0 0.0
    %131 = vmatpush1.msra.mxu0 0.0
    %132 = vmatprep.subr.mxu0 0.0
    %133 = vmatpush1.msra.mxu0 0.0
    %134 = vmatprep.subr.mxu0 0.0
    %135 = vmatpush1.msra.mxu0 0.0
    %136 = vmatprep.subr.mxu0 0.0
    %137 = vmatpush1.msra.mxu0 0.0
    %138 = vmatprep.subr.mxu0 0.0
    %139 = vmatpush1.msra.mxu0 0.0
    %140 = vmatprep.subr.mxu0 0.0
    %141 = vmatpush1.msra.mxu0 0.0
    %142 = vmatprep.subr.mxu0 0.0
    %143 = vmatpush1.msra.mxu0 0.0
    %144 = vmatprep.subr.mxu0 0.0
    %145 = vmatpush1.msra.mxu0 0.0
    %146 = vmatprep.subr.mxu0 0.0
    %147 = vmatpush1.msra.mxu0 0.0
    %148 = vmatprep.subr.mxu0 %v103
    %149 = vmatpush1.msra.mxu0 %v102
    %150 = vmatprep.subr.mxu0 %v101
    %151 = vmatpush1.msra.mxu0 %v100
    %152 = vmatprep.subr.mxu0 0.0
    %153 = vmatpush2.msra.mxu0 0.0
    %154 = vmatprep.subr.mxu0 0.0
    %155 = vmatpush2.msra.mxu0 0.0
    %156 = vmatprep.subr.mxu0 0.0
    %157 = vmatpush2.msra.mxu0 0.0
    %158 = vmatprep.subr.mxu0 0.0
    %159 = vmatpush2.msra.mxu0 0.0
    %160 = vmatprep.subr.mxu0 0.0
    %161 = vmatpush2.msra.mxu0 0.0
    %162 = vmatprep.subr.mxu0 0.0
    %163 = vmatpush2.msra.mxu0 0.0
    %164 = vmatprep.subr.mxu0 0.0
    %165 = vmatpush2.msra.mxu0 0.0
    %166 = vmatprep.subr.mxu0 0.0
    %167 = vmatpush2.msra.mxu0 0.0
    %168 = vmatprep.subr.mxu0 0.0
    %169 = vmatpush2.msra.mxu0 0.0
    %170 = vmatprep.subr.mxu0 0.0
    %171 = vmatpush2.msra.mxu0 0.0
    %172 = vmatprep.subr.mxu0 0.0
    %173 = vmatpush2.msra.mxu0 0.0
    %174 = vmatprep.subr.mxu0 0.0
    %175 = vmatpush2.msra.mxu0 0.0
    %176 = vmatprep.subr.mxu0 0.0
    %177 = vmatpush2.msra.mxu0 0.0
    %178 = vmatprep.subr.mxu0 0.0
    %179 = vmatpush2.msra.mxu0 0.0
    %180 = vmatprep.subr.mxu0 0.0
    %181 = vmatpush2.msra.mxu0 0.0
    %182 = vmatprep.subr.mxu0 0.0
    %183 = vmatpush2.msra.mxu0 0.0
    %184 = vmatprep.mubr.f32.mxu0 0.0
    %185 = vmatmul.mubr.f32.gmra.mxu0 %v118
    %v186 = vpop.f32.mrf.mxu0
    %v187 = vadd.f32 %v109, %v186
    %v188 = vpop.f32.mrf.mxu0
    %v189 = vadd.f32 %v113, %v188
    %190 = vdwg.mxu0
    %v191 = vmax.f32 %v187, 0.0
    %v192 = vmax.f32 %v189, 0.0
    %v193 = vld [vmem:[#allocation7] sm:$0xff]
    %v194 = vld [vmem:[#allocation7 + $0x8] sm:$0xff]
    %v195 = vld [vmem:[#allocation7 + $0x10] sm:$0xff]
    %v196 = vld [vmem:[#allocation7 + $0x18] sm:$0xff]
    %v197 = vld [vmem:[#allocation7 + $0x20] sm:$0xff]
    %v198 = vld [vmem:[#allocation7 + $0x28] sm:$0xff]
    %v199 = vld [vmem:[#allocation7 + $0x30] sm:$0xff]
    %v200 = vld [vmem:[#allocation7 + $0x38] sm:$0xff]
    %v201 = vld [vmem:[#allocation7 + $0x40] sm:$0xff]
    %v202 = vld [vmem:[#allocation7 + $0x48] sm:$0xff]
    %v203 = vld [vmem:[#allocation7 + $0x50] sm:$0xff]
    %v204 = vld [vmem:[#allocation7 + $0x58] sm:$0xff]
    %v205 = vld [vmem:[#allocation7 + $0x60] sm:$0xff]
    %v206 = vld [vmem:[#allocation7 + $0x68] sm:$0xff]
    %v207 = vld [vmem:[#allocation7 + $0x70] sm:$0xff]
    %v208 = vld [vmem:[#allocation7 + $0x78] sm:$0xff]
    %v209 = vld [vmem:[#allocation7 + $0x80] sm:$0xff]
    %v210 = vld [vmem:[#allocation7 + $0x88] sm:$0xff]
    %v211 = vld [vmem:[#allocation7 + $0x90] sm:$0xff]
    %v212 = vld [vmem:[#allocation7 + $0x98] sm:$0xff]
    %v213 = vld [vmem:[#allocation7 + $0xa0] sm:$0xff]
    %v214 = vld [vmem:[#allocation7 + $0xa8] sm:$0xff]
    %v215 = vld [vmem:[#allocation7 + $0xb0] sm:$0xff]
    %v216 = vld [vmem:[#allocation7 + $0xb8] sm:$0xff]
    %v217 = vld [vmem:[#allocation7 + $0xc0] sm:$0xff]
    %v218 = vld [vmem:[#allocation7 + $0xc8] sm:$0xff]
    %v219 = vld [vmem:[#allocation7 + $0xd0] sm:$0xff]
    %v220 = vld [vmem:[#allocation7 + $0xd8] sm:$0xff]
    %v221 = vld [vmem:[#allocation7 + $0xe0] sm:$0xff]
    %v222 = vld [vmem:[#allocation7 + $0xe8] sm:$0xff]
    %v223 = vld [vmem:[#allocation7 + $0xf0] sm:$0xff]
    %v224 = vld [vmem:[#allocation7 + $0xf8] sm:$0xff]
    %v225 = vld [vmem:[%s4] sm:$0x1]
    %v227 = vlaneseq
    %v228 = vshrl.u32 %v227, 7
    %v229 = vsub.s32 0, %v228
    %v230 = vrot.slane %v225, %v229
    %232 = vmatprep.subr.mxu0 0.0
    %233 = vmatpush1.msra.mxu0 %v208
    %234 = vmatprep.subr.mxu0 0.0
    %235 = vmatpush1.msra.mxu0 %v207
    %236 = vmatprep.subr.mxu0 0.0
    %237 = vmatpush1.msra.mxu0 %v206
    %238 = vmatprep.subr.mxu0 0.0
    %239 = vmatpush1.msra.mxu0 %v205
    %240 = vmatprep.subr.mxu0 0.0
    %241 = vmatpush1.msra.mxu0 %v204
    %242 = vmatprep.subr.mxu0 0.0
    %243 = vmatpush1.msra.mxu0 %v203
    %244 = vmatprep.subr.mxu0 0.0
    %245 = vmatpush1.msra.mxu0 %v202
    %246 = vmatprep.subr.mxu0 0.0
    %247 = vmatpush1.msra.mxu0 %v201
    %248 = vmatprep.subr.mxu0 0.0
    %249 = vmatpush1.msra.mxu0 %v200
    %250 = vmatprep.subr.mxu0 0.0
    %251 = vmatpush1.msra.mxu0 %v199
    %252 = vmatprep.subr.mxu0 0.0
    %253 = vmatpush1.msra.mxu0 %v198
    %254 = vmatprep.subr.mxu0 0.0
    %255 = vmatpush1.msra.mxu0 %v197
    %256 = vmatprep.subr.mxu0 0.0
    %257 = vmatpush1.msra.mxu0 %v196
    %258 = vmatprep.subr.mxu0 0.0
    %259 = vmatpush1.msra.mxu0 %v195
    %260 = vmatprep.subr.mxu0 0.0
    %261 = vmatpush1.msra.mxu0 %v194
    %262 = vmatprep.subr.mxu0 0.0
    %263 = vmatpush1.msra.mxu0 %v193
    %264 = vmatprep.subr.mxu0 0.0
    %265 = vmatpush2.msra.mxu0 %v224
    %266 = vmatprep.subr.mxu0 0.0
    %267 = vmatpush2.msra.mxu0 %v223
    %268 = vmatprep.subr.mxu0 0.0
    %269 = vmatpush2.msra.mxu0 %v222
    %270 = vmatprep.subr.mxu0 0.0
    %271 = vmatpush2.msra.mxu0 %v221
    %272 = vmatprep.subr.mxu0 0.0
    %273 = vmatpush2.msra.mxu0 %v220
    %274 = vmatprep.subr.mxu0 0.0
    %275 = vmatpush2.msra.mxu0 %v219
    %276 = vmatprep.subr.mxu0 0.0
    %277 = vmatpush2.msra.mxu0 %v218
    %278 = vmatprep.subr.mxu0 0.0
    %279 = vmatpush2.msra.mxu0 %v217
    %280 = vmatprep.subr.mxu0 0.0
    %281 = vmatpush2.msra.mxu0 %v216
    %282 = vmatprep.subr.mxu0 0.0
    %283 = vmatpush2.msra.mxu0 %v215
    %284 = vmatprep.subr.mxu0 0.0
    %285 = vmatpush2.msra.mxu0 %v214
    %286 = vmatprep.subr.mxu0 0.0
    %287 = vmatpush2.msra.mxu0 %v213
    %288 = vmatprep.subr.mxu0 0.0
    %289 = vmatpush2.msra.mxu0 %v212
    %290 = vmatprep.subr.mxu0 0.0
    %291 = vmatpush2.msra.mxu0 %v211
    %292 = vmatprep.subr.mxu0 0.0
    %293 = vmatpush2.msra.mxu0 %v210
    %294 = vmatprep.subr.mxu0 0.0
    %295 = vmatpush2.msra.mxu0 %v209
    %296 = vmatprep.mubr.f32.mxu0 %v192
    %297 = vmatmul.mubr.f32.gmra.mxu0 %v191
    %v298 = vpop.f32.mrf.mxu0
    %v299 = vadd.f32 %v230, %v298
    %v300 = vpop.f32.mrf.mxu0
    %301 = vdwg.mxu0
    %v302 = vmax.f32 %v299, 0.0
    %v303 = vld [vmem:[#allocation8] sm:$0xff]
    %v304 = vld [vmem:[#allocation8 + $0x8] sm:$0xff]
    %v305 = vld [vmem:[#allocation8 + $0x10] sm:$0xff]
    %v306 = vld [vmem:[#allocation8 + $0x18] sm:$0xff]
    %v307 = vld [vmem:[#allocation8 + $0x20] sm:$0xff]
    %v308 = vld [vmem:[#allocation8 + $0x28] sm:$0xff]
    %v309 = vld [vmem:[#allocation8 + $0x30] sm:$0xff]
    %v310 = vld [vmem:[#allocation8 + $0x38] sm:$0xff]
    %v311 = vld [vmem:[#allocation8 + $0x40] sm:$0xff]
    %v312 = vld [vmem:[#allocation8 + $0x48] sm:$0xff]
    %v313 = vld [vmem:[#allocation8 + $0x50] sm:$0xff]
    %v314 = vld [vmem:[#allocation8 + $0x58] sm:$0xff]
    %v315 = vld [vmem:[#allocation8 + $0x60] sm:$0xff]
    %v316 = vld [vmem:[#allocation8 + $0x68] sm:$0xff]
    %v317 = vld [vmem:[#allocation8 + $0x70] sm:$0xff]
    %v318 = vld [vmem:[#allocation8 + $0x78] sm:$0xff]
    %v319 = vld [vmem:[%s6] sm:$0x1]
    %v321 = vlaneseq
    %v322 = vshrl.u32 %v321, 7
    %v323 = vsub.s32 0, %v322
    %v324 = vrot.slane %v319, %v323
    %326 = vmatprep.subr.mxu0 0.0
    %327 = vmatpush1.msra.mxu0 %v318
    %328 = vmatprep.subr.mxu0 0.0
    %329 = vmatpush1.msra.mxu0 %v317
    %330 = vmatprep.subr.mxu0 0.0
    %331 = vmatpush1.msra.mxu0 %v316
    %332 = vmatprep.subr.mxu0 0.0
    %333 = vmatpush1.msra.mxu0 %v315
    %334 = vmatprep.subr.mxu0 0.0
    %335 = vmatpush1.msra.mxu0 %v314
    %336 = vmatprep.subr.mxu0 0.0
    %337 = vmatpush1.msra.mxu0 %v313
    %338 = vmatprep.subr.mxu0 0.0
    %339 = vmatpush1.msra.mxu0 %v312
    %340 = vmatprep.subr.mxu0 0.0
    %341 = vmatpush1.msra.mxu0 %v311
    %342 = vmatprep.subr.mxu0 0.0
    %343 = vmatpush1.msra.mxu0 %v310
    %344 = vmatprep.subr.mxu0 0.0
    %345 = vmatpush1.msra.mxu0 %v309
    %346 = vmatprep.subr.mxu0 0.0
    %347 = vmatpush1.msra.mxu0 %v308
    %348 = vmatprep.subr.mxu0 0.0
    %349 = vmatpush1.msra.mxu0 %v307
    %350 = vmatprep.subr.mxu0 0.0
    %351 = vmatpush1.msra.mxu0 %v306
    %352 = vmatprep.subr.mxu0 0.0
    %353 = vmatpush1.msra.mxu0 %v305
    %354 = vmatprep.subr.mxu0 0.0
    %355 = vmatpush1.msra.mxu0 %v304
    %356 = vmatprep.subr.mxu0 0.0
    %357 = vmatpush1.msra.mxu0 %v303
    %358 = vmatprep.subr.mxu0 0.0
    %359 = vmatpush2.msra.mxu0 0.0
    %360 = vmatprep.subr.mxu0 0.0
    %361 = vmatpush2.msra.mxu0 0.0
    %362 = vmatprep.subr.mxu0 0.0
    %363 = vmatpush2.msra.mxu0 0.0
    %364 = vmatprep.subr.mxu0 0.0
    %365 = vmatpush2.msra.mxu0 0.0
    %366 = vmatprep.subr.mxu0 0.0
    %367 = vmatpush2.msra.mxu0 0.0
    %368 = vmatprep.subr.mxu0 0.0
    %369 = vmatpush2.msra.mxu0 0.0
    %370 = vmatprep.subr.mxu0 0.0
    %371 = vmatpush2.msra.mxu0 0.0
    %372 = vmatprep.subr.mxu0 0.0
    %373 = vmatpush2.msra.mxu0 0.0
    %374 = vmatprep.subr.mxu0 0.0
    %375 = vmatpush2.msra.mxu0 0.0
    %376 = vmatprep.subr.mxu0 0.0
    %377 = vmatpush2.msra.mxu0 0.0
    %378 = vmatprep.subr.mxu0 0.0
    %379 = vmatpush2.msra.mxu0 0.0
    %380 = vmatprep.subr.mxu0 0.0
    %381 = vmatpush2.msra.mxu0 0.0
    %382 = vmatprep.subr.mxu0 0.0
    %383 = vmatpush2.msra.mxu0 0.0
    %384 = vmatprep.subr.mxu0 0.0
    %385 = vmatpush2.msra.mxu0 0.0
    %386 = vmatprep.subr.mxu0 0.0
    %387 = vmatpush2.msra.mxu0 0.0
    %388 = vmatprep.subr.mxu0 0.0
    %389 = vmatpush2.msra.mxu0 0.0
    %390 = vmatprep.mubr.f32.mxu0 0.0
    %391 = vmatmul.mubr.f32.gmra.mxu0 %v302
    %v392 = vpop.f32.mrf.mxu0
    %v393 = vadd.f32 %v324, %v392
    %v394 = vpop.f32.mrf.mxu0
    %395 = vdwg.mxu0
    %v396 = vmax.f32 %v393, 0.0
    %v397 = vld [vmem:[#allocation10] sm:$0xff]
    %v398 = vld [vmem:[#allocation10 + $0x8] sm:$0xff]
    %v399 = vld [vmem:[#allocation10 + $0x10] sm:$0xff]
    %v400 = vld [vmem:[#allocation10 + $0x18] sm:$0xff]
    %v401 = vld [vmem:[#allocation10 + $0x20] sm:$0xff]
    %v402 = vld [vmem:[#allocation10 + $0x28] sm:$0xff]
    %v403 = vld [vmem:[#allocation10 + $0x30] sm:$0xff]
    %v404 = vld [vmem:[#allocation10 + $0x38] sm:$0xff]
    %v405 = vld [vmem:[#allocation10 + $0x40] sm:$0xff]
    %v406 = vld [vmem:[#allocation10 + $0x48] sm:$0xff]
    %v407 = vld [vmem:[#allocation10 + $0x50] sm:$0xff]
    %v408 = vld [vmem:[#allocation10 + $0x58] sm:$0xff]
    %v409 = vld [vmem:[#allocation10 + $0x60] sm:$0xff]
    %v410 = vld [vmem:[#allocation10 + $0x68] sm:$0xff]
    %v411 = vld [vmem:[#allocation10 + $0x70] sm:$0xff]
    %v412 = vld [vmem:[#allocation10 + $0x78] sm:$0xff]
    %v413 = vld [vmem:[%s8] sm:$0x1]
    %v415 = vlaneseq
    %v416 = vshrl.u32 %v415, 7
    %v417 = vsub.s32 0, %v416
    %v418 = vrot.slane %v413, %v417
    %420 = vmatprep.subr.mxu0 0.0
    %421 = vmatpush1.msra.mxu0 %v412
    %422 = vmatprep.subr.mxu0 0.0
    %423 = vmatpush1.msra.mxu0 %v411
    %424 = vmatprep.subr.mxu0 0.0
    %425 = vmatpush1.msra.mxu0 %v410
    %426 = vmatprep.subr.mxu0 0.0
    %427 = vmatpush1.msra.mxu0 %v409
    %428 = vmatprep.subr.mxu0 0.0
    %429 = vmatpush1.msra.mxu0 %v408
    %430 = vmatprep.subr.mxu0 0.0
    %431 = vmatpush1.msra.mxu0 %v407
    %432 = vmatprep.subr.mxu0 0.0
    %433 = vmatpush1.msra.mxu0 %v406
    %434 = vmatprep.subr.mxu0 0.0
    %435 = vmatpush1.msra.mxu0 %v405
    %436 = vmatprep.subr.mxu0 0.0
    %437 = vmatpush1.msra.mxu0 %v404
    %438 = vmatprep.subr.mxu0 0.0
    %439 = vmatpush1.msra.mxu0 %v403
    %440 = vmatprep.subr.mxu0 0.0
    %441 = vmatpush1.msra.mxu0 %v402
    %442 = vmatprep.subr.mxu0 0.0
    %443 = vmatpush1.msra.mxu0 %v401
    %444 = vmatprep.subr.mxu0 0.0
    %445 = vmatpush1.msra.mxu0 %v400
    %446 = vmatprep.subr.mxu0 0.0
    %447 = vmatpush1.msra.mxu0 %v399
    %448 = vmatprep.subr.mxu0 0.0
    %449 = vmatpush1.msra.mxu0 %v398
    %450 = vmatprep.subr.mxu0 0.0
    %451 = vmatpush1.msra.mxu0 %v397
    %452 = vmatprep.subr.mxu0 0.0
    %453 = vmatpush2.msra.mxu0 0.0
    %454 = vmatprep.subr.mxu0 0.0
    %455 = vmatpush2.msra.mxu0 0.0
    %456 = vmatprep.subr.mxu0 0.0
    %457 = vmatpush2.msra.mxu0 0.0
    %458 = vmatprep.subr.mxu0 0.0
    %459 = vmatpush2.msra.mxu0 0.0
    %460 = vmatprep.subr.mxu0 0.0
    %461 = vmatpush2.msra.mxu0 0.0
    %462 = vmatprep.subr.mxu0 0.0
    %463 = vmatpush2.msra.mxu0 0.0
    %464 = vmatprep.subr.mxu0 0.0
    %465 = vmatpush2.msra.mxu0 0.0
    %466 = vmatprep.subr.mxu0 0.0
    %467 = vmatpush2.msra.mxu0 0.0
    %468 = vmatprep.subr.mxu0 0.0
    %469 = vmatpush2.msra.mxu0 0.0
    %470 = vmatprep.subr.mxu0 0.0
    %471 = vmatpush2.msra.mxu0 0.0
    %472 = vmatprep.subr.mxu0 0.0
    %473 = vmatpush2.msra.mxu0 0.0
    %474 = vmatprep.subr.mxu0 0.0
    %475 = vmatpush2.msra.mxu0 0.0
    %476 = vmatprep.subr.mxu0 0.0
    %477 = vmatpush2.msra.mxu0 0.0
    %478 = vmatprep.subr.mxu0 0.0
    %479 = vmatpush2.msra.mxu0 0.0
    %480 = vmatprep.subr.mxu0 0.0
    %481 = vmatpush2.msra.mxu0 0.0
    %482 = vmatprep.subr.mxu0 0.0
    %483 = vmatpush2.msra.mxu0 0.0
    %484 = vmatprep.mubr.f32.mxu0 0.0
    %485 = vmatmul.mubr.f32.gmra.mxu0 %v396
    %v486 = vpop.f32.mrf.mxu0
    %v487 = vadd.f32 %v418, %v486
    %v488 = vpop.f32.mrf.mxu0
    %489 = vdwg.mxu0
    %490 = vst [vmem:[#allocation11] sm:$0xff] %v487
    // Predicated region
    $region58: #{tpu_custom_call.1} parent=1 // pred_check
      _
    $region59: #{tpu_custom_call.1} parent=1 // pred_check_branch
      %492 = sbr.rel (0) target = $region61
    $region60: #{tpu_custom_call.1} parent=1 // pred_region
      %s494 = ssub.s32 128, 128
      %495 = vsyncadd [#allocation4], %s494
      %s497 = sshll.u32 [#allocation11], 4
      %s498 = int_to_ptr.vmem [resolvable:$true] %s497
      %500 = dma.vmem_to_hbm [thread:$0]  %s498, 128, %s9, [#allocation4]
    $region61: #{tpu_custom_call.1} parent=1 // pred_fallthru
      _
    // Predicated region
    $region62: #{tpu_custom_call.1} parent=1 // pred_check
      _
    $region63: #{tpu_custom_call.1} parent=1 // pred_check_branch
      %502 = sbr.rel (0) target = $region65
    $region64: #{tpu_custom_call.1} parent=1 // pred_region
      %503 = dma.done [#allocation4], 128
    $region65: #{tpu_custom_call.1} parent=1 // pred_fallthru
      _
    %504 = vsyncpa [#allocation3], 1
    %505 = vsyncpa [#allocation6], 1
    %506 = vsyncpa [#allocation9], 1
    %507 = vsyncpa [#allocation4], 1

</llo_original>
